<compile_context>
chip_gen: v5e
topology: v5e:2x2
jax: 0.10.0
libtpu: 0.0.40
codegen_flags: <defaults>
</compile_context>

<pallas_src>
import math

import jax
import jax.numpy as jnp
import numpy as np
from jax.experimental import pallas as pl
from jax.experimental.pallas import tpu as pltpu  # noqa: F401  (kept for the roll fallback)


def make_pairwise_potential(channel, image_size, kernel_size):
    assert kernel_size % 2 == 1, "kernel_size must be odd (as the module assumes)"
    H = W = image_size
    k = kernel_size
    p = k // 2
    Wp = W + 2 * p

    SLAB = H * Wp                              # useful flat positions q = i*Wp + j
    OUT_FLAT = -(-SLAB // 128) * 128           # lane-dense compute/output width
    max_shift = (k - 1) * Wp + (k - 1)         # largest window shift a*Wp + b
    IN_ROWS = -(-(max_shift + OUT_FLAT) // Wp)  # rows so every slice is in bounds
    IN_FLAT = IN_ROWS * Wp

    inv_kk = 1.0 / float(k * k)

    # Trace-time constants. (a, b) = (dx % k, dy % k) reproduces torch's
    # negative indexing into the unfold patch; s = a*Wp + b is that window's
    # flat lane shift; c = -0.5*sqrt(dx^2+dy^2).  `second` sums the distances
    # over *all* k*k offsets.  The (0,0) offset is dropped: its exp term is
    # exactly 1.0 and is folded into the `first` initializer.
    offsets = []
    second = 0.0
    for dx in range(-p, p + 1):
        for dy in range(-p, p + 1):
            a, b = dx % k, dy % k
            d = math.sqrt(dx * dx + dy * dy)
            second += d
            if dx == 0 and dy == 0:
                continue
            offsets.append((a * Wp + b, -0.5 * d))
    w2_const = second * inv_kk                 # python float, folded at trace time

    def kernel(x_ref, w1_ref, w2_ref, out_ref):
        # Flat position q = i*Wp + j holds x_pad[i, j]; the unfold "center"
        # (patch entry (0,0)) is the top-left HxW window, i.e. shift 0.
        center = x_ref[:, 0:OUT_FLAT].astype(jnp.float32)        # (B*C, OUT_FLAT)

        # (0,0) term == exp(0) == 1.0, pre-folded into the init.
        first = jnp.ones(out_ref.shape, jnp.float32)

        # Statically unrolled k*k - 1 neighbour windows; each is a static
        # lane-dense slice of the VMEM input block (shift s = a*Wp + b).
        for s, c in offsets:
            nei = x_ref[:, s:s + OUT_FLAT].astype(jnp.float32)   # (B*C, OUT_FLAT)
            diff = center - nei
            first = first + jnp.exp(diff * diff * -0.5 + c)      # mul + fma + exp

        # Full-width epilogue + unmasked store; junk lanes vanish because the
        # w1/w2 slabs are zero there (see coupling note in the header).
        gp = first * (w1_ref[...] * inv_kk) + w2_ref[...] * w2_const
        out_ref[...] = gp.astype(out_ref.dtype)

    def _to_slab(w, B):
        # (1, C, H*W) -> zero-padded (C, H*Wp) -> zero-padded (C, OUT_FLAT),
        # tiled over batch to line up with the folded (B*C, OUT_FLAT) layout.
        w3 = w.reshape(channel, H, W).astype(jnp.float32)
        w3 = jnp.pad(w3, ((0, 0), (0, 0), (0, Wp - W)))
        ws = jnp.pad(w3.reshape(channel, SLAB), ((0, 0), (0, OUT_FLAT - SLAB)))
        return jnp.tile(ws, (B, 1))                              # (B*C, OUT_FLAT)

    def forward(x, w1, w2):
        B = x.shape[0]
        BC = B * channel

        # One pad pass: left/right/top pad of p plus enough extra bottom rows
        # that every shifted full-width window slice stays in bounds; then a
        # single reshape to the lane-dense folded layout.
        x_pad = jnp.pad(x, ((0, 0), (0, 0), (p, IN_ROWS - H - p), (p, p)))
        x_flat = x_pad.reshape(BC, IN_FLAT)

        w1s = _to_slab(w1, B)
        w2s = _to_slab(w2, B)

        cost = pl.CostEstimate(
            flops=(5 * (k * k - 1) + 3) * BC * OUT_FLAT,
            transcendentals=(k * k - 1) * BC * OUT_FLAT,
            bytes_accessed=4 * BC * (IN_FLAT + 3 * OUT_FLAT),
        )

        out = pl.pallas_call(
            kernel,
            out_shape=jax.ShapeDtypeStruct((BC, OUT_FLAT), x.dtype),
            cost_estimate=cost,
        )(x_flat, w1s, w2s)

        # Drop the padded lanes / Wp - W junk columns and restore (B, C, H, W).
        return out[:, :SLAB].reshape(B, channel, H, Wp)[:, :, :, :W]

    return forward


def reference(x, w1, w2, channel, image_size, kernel_size):
    """Pure-JAX reference mirroring the PyTorch unfold semantics."""
    H = W = image_size
    k = kernel_size
    p = k // 2
    x_pad = jnp.pad(x, ((0, 0), (0, 0), (p, p), (p, p)))
    center = x_pad[:, :, 0:H, 0:W]
    first = jnp.zeros_like(center)
    second = 0.0
    for dx in range(-p, p + 1):
        for dy in range(-p, p + 1):
            a, b = dx % k, dy % k
            nei = x_pad[:, :, a:a + H, b:b + W]
            diff = (center - nei) ** 2
            first = first + jnp.exp(-0.5 * diff - 0.5 * math.sqrt(dx * dx + dy * dy))
            second += math.sqrt(dx * dx + dy * dy)
    gp = (w1.reshape(1, channel, H, W) * (first / (k * k))
          + w2.reshape(1, channel, H, W) * (second / (k * k)))
    return gp


if __name__ == "__main__":
    B, C, S, K = 2, 4, 16, 3   # batch, channel, image_size, kernel_size

    key = jax.random.PRNGKey(0)
    kx, kw1, kw2 = jax.random.split(key, 3)
    x = jax.random.normal(kx, (B, C, S, S), dtype=jnp.float32)
    # torch.rand -> uniform [0, 1); parameter shapes (1, C, S*S)
    w1 = jax.random.uniform(kw1, (1, C, S * S), dtype=jnp.float32)
    w2 = jax.random.uniform(kw2, (1, C, S * S), dtype=jnp.float32)

    fwd = make_pairwise_potential(channel=C, image_size=S, kernel_size=K)
    out = jax.block_until_ready(fwd(x, w1, w2))

    ref = reference(x, w1, w2, C, S, K)
    np.testing.assert_allclose(np.asarray(out), np.asarray(ref),
                               rtol=1e-5, atol=1e-5)

    print("KERNEL_OK")
</pallas_src>

<mosaic_0001>
module attributes {stable_mosaic.version = 11 : i64} {
  func.func @kernel(%arg0: memref<8x432xf32, #tpu.memory_space<vmem>>, %arg1: memref<8x384xf32, #tpu.memory_space<vmem>>, %arg2: memref<8x384xf32, #tpu.memory_space<vmem>>, %arg3: memref<8x384xf32, #tpu.memory_space<vmem>>) attributes {dimension_semantics = [], scalar_prefetch = 0 : i64, scratch_operands = 0 : i64, tpu.core_type = #tpu.core_type<tc>} {
    %c0 = arith.constant 0 : index
    %c0_0 = arith.constant 0 : index
    %0 = vector.load %arg0[%c0, %c0_0] : memref<8x432xf32, #tpu.memory_space<vmem>>, vector<8x384xf32>
    %cst = arith.constant 1.000000e+00 : f32
    %1 = vector.broadcast %cst : f32 to vector<8x384xf32>
    %c0_1 = arith.constant 0 : index
    %c38 = arith.constant 38 : index
    %2 = vector.load %arg0[%c0_1, %c38] : memref<8x432xf32, #tpu.memory_space<vmem>>, vector<8x384xf32>
    %3 = arith.subf %0, %2 : vector<8x384xf32>
    %4 = arith.mulf %3, %3 : vector<8x384xf32>
    %cst_2 = arith.constant -5.000000e-01 : f32
    %5 = vector.broadcast %cst_2 : f32 to vector<8x384xf32>
    %6 = arith.mulf %4, %5 : vector<8x384xf32>
    %cst_3 = arith.constant -0.707106769 : f32
    %7 = vector.broadcast %cst_3 : f32 to vector<8x384xf32>
    %8 = arith.addf %6, %7 : vector<8x384xf32>
    %9 = math.exp %8 : vector<8x384xf32>
    %10 = arith.addf %1, %9 : vector<8x384xf32>
    %c0_4 = arith.constant 0 : index
    %c36 = arith.constant 36 : index
    %11 = vector.load %arg0[%c0_4, %c36] : memref<8x432xf32, #tpu.memory_space<vmem>>, vector<8x384xf32>
    %12 = arith.subf %0, %11 : vector<8x384xf32>
    %13 = arith.mulf %12, %12 : vector<8x384xf32>
    %cst_5 = arith.constant -5.000000e-01 : f32
    %14 = vector.broadcast %cst_5 : f32 to vector<8x384xf32>
    %15 = arith.mulf %13, %14 : vector<8x384xf32>
    %cst_6 = arith.constant -5.000000e-01 : f32
    %16 = vector.broadcast %cst_6 : f32 to vector<8x384xf32>
    %17 = arith.addf %15, %16 : vector<8x384xf32>
    %18 = math.exp %17 : vector<8x384xf32>
    %19 = arith.addf %10, %18 : vector<8x384xf32>
    %c0_7 = arith.constant 0 : index
    %c37 = arith.constant 37 : index
    %20 = vector.load %arg0[%c0_7, %c37] : memref<8x432xf32, #tpu.memory_space<vmem>>, vector<8x384xf32>
    %21 = arith.subf %0, %20 : vector<8x384xf32>
    %22 = arith.mulf %21, %21 : vector<8x384xf32>
    %cst_8 = arith.constant -5.000000e-01 : f32
    %23 = vector.broadcast %cst_8 : f32 to vector<8x384xf32>
    %24 = arith.mulf %22, %23 : vector<8x384xf32>
    %cst_9 = arith.constant -0.707106769 : f32
    %25 = vector.broadcast %cst_9 : f32 to vector<8x384xf32>
    %26 = arith.addf %24, %25 : vector<8x384xf32>
    %27 = math.exp %26 : vector<8x384xf32>
    %28 = arith.addf %19, %27 : vector<8x384xf32>
    %c0_10 = arith.constant 0 : index
    %c2 = arith.constant 2 : index
    %29 = vector.load %arg0[%c0_10, %c2] : memref<8x432xf32, #tpu.memory_space<vmem>>, vector<8x384xf32>
    %30 = arith.subf %0, %29 : vector<8x384xf32>
    %31 = arith.mulf %30, %30 : vector<8x384xf32>
    %cst_11 = arith.constant -5.000000e-01 : f32
    %32 = vector.broadcast %cst_11 : f32 to vector<8x384xf32>
    %33 = arith.mulf %31, %32 : vector<8x384xf32>
    %cst_12 = arith.constant -5.000000e-01 : f32
    %34 = vector.broadcast %cst_12 : f32 to vector<8x384xf32>
    %35 = arith.addf %33, %34 : vector<8x384xf32>
    %36 = math.exp %35 : vector<8x384xf32>
    %37 = arith.addf %28, %36 : vector<8x384xf32>
    %c0_13 = arith.constant 0 : index
    %c1 = arith.constant 1 : index
    %38 = vector.load %arg0[%c0_13, %c1] : memref<8x432xf32, #tpu.memory_space<vmem>>, vector<8x384xf32>
    %39 = arith.subf %0, %38 : vector<8x384xf32>
    %40 = arith.mulf %39, %39 : vector<8x384xf32>
    %cst_14 = arith.constant -5.000000e-01 : f32
    %41 = vector.broadcast %cst_14 : f32 to vector<8x384xf32>
    %42 = arith.mulf %40, %41 : vector<8x384xf32>
    %cst_15 = arith.constant -5.000000e-01 : f32
    %43 = vector.broadcast %cst_15 : f32 to vector<8x384xf32>
    %44 = arith.addf %42, %43 : vector<8x384xf32>
    %45 = math.exp %44 : vector<8x384xf32>
    %46 = arith.addf %37, %45 : vector<8x384xf32>
    %c0_16 = arith.constant 0 : index
    %c20 = arith.constant 20 : index
    %47 = vector.load %arg0[%c0_16, %c20] : memref<8x432xf32, #tpu.memory_space<vmem>>, vector<8x384xf32>
    %48 = arith.subf %0, %47 : vector<8x384xf32>
    %49 = arith.mulf %48, %48 : vector<8x384xf32>
    %cst_17 = arith.constant -5.000000e-01 : f32
    %50 = vector.broadcast %cst_17 : f32 to vector<8x384xf32>
    %51 = arith.mulf %49, %50 : vector<8x384xf32>
    %cst_18 = arith.constant -0.707106769 : f32
    %52 = vector.broadcast %cst_18 : f32 to vector<8x384xf32>
    %53 = arith.addf %51, %52 : vector<8x384xf32>
    %54 = math.exp %53 : vector<8x384xf32>
    %55 = arith.addf %46, %54 : vector<8x384xf32>
    %c0_19 = arith.constant 0 : index
    %c18 = arith.constant 18 : index
    %56 = vector.load %arg0[%c0_19, %c18] : memref<8x432xf32, #tpu.memory_space<vmem>>, vector<8x384xf32>
    %57 = arith.subf %0, %56 : vector<8x384xf32>
    %58 = arith.mulf %57, %57 : vector<8x384xf32>
    %cst_20 = arith.constant -5.000000e-01 : f32
    %59 = vector.broadcast %cst_20 : f32 to vector<8x384xf32>
    %60 = arith.mulf %58, %59 : vector<8x384xf32>
    %cst_21 = arith.constant -5.000000e-01 : f32
    %61 = vector.broadcast %cst_21 : f32 to vector<8x384xf32>
    %62 = arith.addf %60, %61 : vector<8x384xf32>
    %63 = math.exp %62 : vector<8x384xf32>
    %64 = arith.addf %55, %63 : vector<8x384xf32>
    %c0_22 = arith.constant 0 : index
    %c19 = arith.constant 19 : index
    %65 = vector.load %arg0[%c0_22, %c19] : memref<8x432xf32, #tpu.memory_space<vmem>>, vector<8x384xf32>
    %66 = arith.subf %0, %65 : vector<8x384xf32>
    %67 = arith.mulf %66, %66 : vector<8x384xf32>
    %cst_23 = arith.constant -5.000000e-01 : f32
    %68 = vector.broadcast %cst_23 : f32 to vector<8x384xf32>
    %69 = arith.mulf %67, %68 : vector<8x384xf32>
    %cst_24 = arith.constant -0.707106769 : f32
    %70 = vector.broadcast %cst_24 : f32 to vector<8x384xf32>
    %71 = arith.addf %69, %70 : vector<8x384xf32>
    %72 = math.exp %71 : vector<8x384xf32>
    %73 = arith.addf %64, %72 : vector<8x384xf32>
    %c0_25 = arith.constant 0 : index
    %c0_26 = arith.constant 0 : index
    %74 = vector.load %arg1[%c0_25, %c0_26] : memref<8x384xf32, #tpu.memory_space<vmem>>, vector<8x384xf32>
    %cst_27 = arith.constant 0.111111112 : f32
    %75 = vector.broadcast %cst_27 : f32 to vector<8x384xf32>
    %76 = arith.mulf %74, %75 : vector<8x384xf32>
    %77 = arith.mulf %73, %76 : vector<8x384xf32>
    %c0_28 = arith.constant 0 : index
    %c0_29 = arith.constant 0 : index
    %78 = vector.load %arg2[%c0_28, %c0_29] : memref<8x384xf32, #tpu.memory_space<vmem>>, vector<8x384xf32>
    %cst_30 = arith.constant 1.07298386 : f32
    %79 = vector.broadcast %cst_30 : f32 to vector<8x384xf32>
    %80 = arith.mulf %78, %79 : vector<8x384xf32>
    %81 = arith.addf %77, %80 : vector<8x384xf32>
    %c0_31 = arith.constant 0 : index
    %c0_32 = arith.constant 0 : index
    %82 = vector.load %arg3[%c0_31, %c0_32] : memref<8x384xf32, #tpu.memory_space<vmem>>, vector<8x384xf32>
    tpu.vector_store %arg3[%c0_31, %c0_32], %81 {strides = array<i32>} : memref<8x384xf32, #tpu.memory_space<vmem>>, vector<8x384xf32>,
    return
  }
}

</mosaic_0001>

<llo_original>
// kernel: tpu_custom_call.1
$region0: #{tpu_custom_call.1}
  #allocation0 [shape = 'u32[]', space=smem, size = 0x4, offset = 0x4, fixed_abs, tag = 'smem constant byte address 0x4 - core index']
  #allocation1 [shape = 'u32[72,128]{1,0:T(1,128)}', space=vmem, size = 0x9000, scoped, tag = 'internal scratch']
  %s0 = inlined_call_operand.hbm [shape: f32[8,432], index: 0, kind: input, shape index: {}]
  %s1 = inlined_call_operand.hbm [shape: f32[8,384], index: 1, kind: input, shape index: {}]
  %s2 = inlined_call_operand.hbm [shape: f32[8,384], index: 2, kind: input, shape index: {}]
  %s3 = inlined_call_operand.hbm [shape: f32[8,384], index: 3, kind: output, shape index: {}]
  %s4 = sld [smem:[#allocation0]]
  $region34: #{tpu_custom_call.1} parent=0
    _
  %s6 = ssub.s32 1, %s4
  %s7 = scalar_select 0, %s6, %s4
  $region1: #{tpu_custom_call.1} parent=0
    #allocation2 [shape = 'u8[16384]{0}', space=vmem, size = 0x4000, scoped, tag = 'input window, operand 0, single buffered']
    #allocation3 [shape = 's32[1]{0}', space=sflag, size = 0x4, scoped, tag = 'scoped memory for tpu_custom_call.1']
    #allocation4 [shape = 's32[1]{0}', space=sflag, size = 0x4, scoped, tag = 'scoped memory for tpu_custom_call.1']
    #allocation5 [shape = 'u8[12288]{0}', space=vmem, size = 0x3000, scoped, tag = 'input window, operand 1, single buffered']
    #allocation6 [shape = 's32[1]{0}', space=sflag, size = 0x4, scoped, tag = 'scoped memory for tpu_custom_call.1']
    #allocation7 [shape = 'u8[12288]{0}', space=vmem, size = 0x3000, scoped, tag = 'input window, operand 2, single buffered']
    #allocation8 [shape = 'u8[12288]{0}', space=vmem, size = 0x3000, scoped, tag = 'output window, operand 0, single buffered']
    %8 = vsyncpa [#allocation3], 0
    %9 = vsyncpa [#allocation6], 0
    %10 = vsyncpa [#allocation4], 0
    // Predicated region
    $region2: #{tpu_custom_call.1} parent=1 // pred_check
      _
    $region3: #{tpu_custom_call.1} parent=1 // pred_check_branch
      %12 = sbr.rel (0) target = $region5
    $region4: #{tpu_custom_call.1} parent=1 // pred_region
      %14 = vsyncadd [#allocation3], 0
      %s16 = sshll.u32 %s0, 4
      %s17 = int_to_ptr.hbm [resolvable:$true] %s16
      %s18 = sshll.u32 [#allocation2], 4
      %s19 = int_to_ptr.vmem [resolvable:$true] %s18
      %21 = dma.hbm_to_vmem [thread:$0]  %s17, 512, %s19, [#allocation3]
    $region5: #{tpu_custom_call.1} parent=1 // pred_fallthru
      _
    // Predicated region
    $region6: #{tpu_custom_call.1} parent=1 // pred_check
      _
    $region7: #{tpu_custom_call.1} parent=1 // pred_check_branch
      %23 = sbr.rel (0) target = $region9
    $region8: #{tpu_custom_call.1} parent=1 // pred_region
      %25 = vsyncadd [#allocation6], 0
      %s27 = sshll.u32 %s1, 4
      %s28 = int_to_ptr.hbm [resolvable:$true] %s27
      %s29 = sshll.u32 [#allocation5], 4
      %s30 = int_to_ptr.vmem [resolvable:$true] %s29
      %32 = dma.hbm_to_vmem [thread:$0]  %s28, 384, %s30, [#allocation6]
    $region9: #{tpu_custom_call.1} parent=1 // pred_fallthru
      _
    // Predicated region
    $region10: #{tpu_custom_call.1} parent=1 // pred_check
      _
    $region11: #{tpu_custom_call.1} parent=1 // pred_check_branch
      %34 = sbr.rel (0) target = $region13
    $region12: #{tpu_custom_call.1} parent=1 // pred_region
      %36 = vsyncadd [#allocation6], 0
      %s38 = sshll.u32 %s2, 4
      %s39 = int_to_ptr.hbm [resolvable:$true] %s38
      %s40 = sshll.u32 [#allocation7], 4
      %s41 = int_to_ptr.vmem [resolvable:$true] %s40
      %43 = dma.hbm_to_vmem [thread:$0]  %s39, 384, %s41, [#allocation6]
    $region13: #{tpu_custom_call.1} parent=1 // pred_fallthru
      _
    // Predicated region
    $region14: #{tpu_custom_call.1} parent=1 // pred_check
      _
    $region15: #{tpu_custom_call.1} parent=1 // pred_check_branch
      %45 = sbr.rel (0) target = $region17
    $region16: #{tpu_custom_call.1} parent=1 // pred_region
      %47 = dma.done [#allocation3], 512
    $region17: #{tpu_custom_call.1} parent=1 // pred_fallthru
      _
    // Predicated region
    $region18: #{tpu_custom_call.1} parent=1 // pred_check
      _
    $region19: #{tpu_custom_call.1} parent=1 // pred_check_branch
      %49 = sbr.rel (0) target = $region21
    $region20: #{tpu_custom_call.1} parent=1 // pred_region
      %51 = dma.done [#allocation6], 384
    $region21: #{tpu_custom_call.1} parent=1 // pred_fallthru
      _
    // Predicated region
    $region22: #{tpu_custom_call.1} parent=1 // pred_check
      _
    $region23: #{tpu_custom_call.1} parent=1 // pred_check_branch
      %53 = sbr.rel (0) target = $region25
    $region24: #{tpu_custom_call.1} parent=1 // pred_region
      %55 = dma.done [#allocation6], 384
    $region25: #{tpu_custom_call.1} parent=1 // pred_fallthru
      _
    %v56 = vld [vmem:[#allocation2] sm:$0xff]
    %v57 = vld [vmem:[#allocation2 + $0x8] sm:$0xff]
    %v58 = vld [vmem:[#allocation2 + $0x10] sm:$0xff]
    %v59 = vld [vmem:[#allocation2 + $0x18] sm:$0xff]
    %64 = vrot.lane.b32.xlu0 %v56, 90
    %v65 = vpop.permute.xlu0 %64
    %66 = vrot.lane.b32.xlu0 %v57, 90
    %v67 = vpop.permute.xlu0 %66
    %68 = vrot.lane.b32.xlu0 %v58, 90
    %v69 = vpop.permute.xlu0 %68
    %70 = vrot.lane.b32.xlu0 %v59, 90
    %v71 = vpop.permute.xlu0 %70
    %vm72 = vcmask 736256
    %v73 = vsel %vm72, %v65, %v67
    %v74 = vsel %vm72, %v67, %v69
    %v75 = vsel %vm72, %v69, %v71
    %v79 = vsub.f32 %v56, %v73
    %v80 = vsub.f32 %v57, %v74
    %v81 = vsub.f32 %v58, %v75
    %v82 = vmul.f32 %v79, %v79
    %v83 = vmul.f32 %v80, %v80
    %v84 = vmul.f32 %v81, %v81
    %v85 = vmul.f32 %v82, -0.5
    %v86 = vmul.f32 %v83, -0.5
    %v87 = vmul.f32 %v84, -0.5
    %v88 = vadd.f32 %v85, -0.70710677
    %v89 = vadd.f32 %v86, -0.70710677
    %v90 = vadd.f32 %v87, -0.70710677
    %v91 = vmul.f32 %v88, 1.442695
    %v92 = vpow.pop %v91
    %v93 = vmul.f32 %v89, 1.442695
    %v94 = vpow.pop %v93
    %v95 = vmul.f32 %v90, 1.442695
    %v96 = vpow.pop %v95
    %v97 = vadd.f32 %v92, 1.0
    %v98 = vadd.f32 %v94, 1.0
    %v99 = vadd.f32 %v96, 1.0
    %100 = vrot.lane.b32.xlu0 %v56, 92
    %v101 = vpop.permute.xlu0 %100
    %102 = vrot.lane.b32.xlu0 %v57, 92
    %v103 = vpop.permute.xlu0 %102
    %104 = vrot.lane.b32.xlu0 %v58, 92
    %v105 = vpop.permute.xlu0 %104
    %106 = vrot.lane.b32.xlu0 %v59, 92
    %v107 = vpop.permute.xlu0 %106
    %vm108 = vcmask 752640
    %v109 = vsel %vm108, %v101, %v103
    %v110 = vsel %vm108, %v103, %v105
    %v111 = vsel %vm108, %v105, %v107
    %v115 = vsub.f32 %v56, %v109
    %v116 = vsub.f32 %v57, %v110
    %v117 = vsub.f32 %v58, %v111
    %v118 = vmul.f32 %v115, %v115
    %v119 = vmul.f32 %v116, %v116
    %v120 = vmul.f32 %v117, %v117
    %v121 = vmul.f32 %v118, -0.5
    %v122 = vmul.f32 %v119, -0.5
    %v123 = vmul.f32 %v120, -0.5
    %v124 = vadd.f32 %v121, -0.5
    %v125 = vadd.f32 %v122, -0.5
    %v126 = vadd.f32 %v123, -0.5
    %v127 = vmul.f32 %v124, 1.442695
    %v128 = vpow.pop %v127
    %v129 = vmul.f32 %v125, 1.442695
    %v130 = vpow.pop %v129
    %v131 = vmul.f32 %v126, 1.442695
    %v132 = vpow.pop %v131
    %v133 = vadd.f32 %v97, %v128
    %v134 = vadd.f32 %v98, %v130
    %v135 = vadd.f32 %v99, %v132
    %136 = vrot.lane.b32.xlu0 %v56, 91
    %v137 = vpop.permute.xlu0 %136
    %138 = vrot.lane.b32.xlu0 %v57, 91
    %v139 = vpop.permute.xlu0 %138
    %140 = vrot.lane.b32.xlu0 %v58, 91
    %v141 = vpop.permute.xlu0 %140
    %142 = vrot.lane.b32.xlu0 %v59, 91
    %v143 = vpop.permute.xlu0 %142
    %vm144 = vcmask 744448
    %v145 = vsel %vm144, %v137, %v139
    %v146 = vsel %vm144, %v139, %v141
    %v147 = vsel %vm144, %v141, %v143
    %v151 = vsub.f32 %v56, %v145
    %v152 = vsub.f32 %v57, %v146
    %v153 = vsub.f32 %v58, %v147
    %v154 = vmul.f32 %v151, %v151
    %v155 = vmul.f32 %v152, %v152
    %v156 = vmul.f32 %v153, %v153
    %v157 = vmul.f32 %v154, -0.5
    %v158 = vmul.f32 %v155, -0.5
    %v159 = vmul.f32 %v156, -0.5
    %v160 = vadd.f32 %v157, -0.70710677
    %v161 = vadd.f32 %v158, -0.70710677
    %v162 = vadd.f32 %v159, -0.70710677
    %v163 = vmul.f32 %v160, 1.442695
    %v164 = vpow.pop %v163
    %v165 = vmul.f32 %v161, 1.442695
    %v166 = vpow.pop %v165
    %v167 = vmul.f32 %v162, 1.442695
    %v168 = vpow.pop %v167
    %v169 = vadd.f32 %v133, %v164
    %v170 = vadd.f32 %v134, %v166
    %v171 = vadd.f32 %v135, %v168
    %172 = vrot.lane.b32.xlu0 %v56, 126
    %v173 = vpop.permute.xlu0 %172
    %174 = vrot.lane.b32.xlu0 %v57, 126
    %v175 = vpop.permute.xlu0 %174
    %176 = vrot.lane.b32.xlu0 %v58, 126
    %v177 = vpop.permute.xlu0 %176
    %178 = vrot.lane.b32.xlu0 %v59, 126
    %v179 = vpop.permute.xlu0 %178
    %vm180 = vcmask 1031168
    %v181 = vsel %vm180, %v173, %v175
    %v182 = vsel %vm180, %v175, %v177
    %v183 = vsel %vm180, %v177, %v179
    %v187 = vsub.f32 %v56, %v181
    %v188 = vsub.f32 %v57, %v182
    %v189 = vsub.f32 %v58, %v183
    %v190 = vmul.f32 %v187, %v187
    %v191 = vmul.f32 %v188, %v188
    %v192 = vmul.f32 %v189, %v189
    %v193 = vmul.f32 %v190, -0.5
    %v194 = vmul.f32 %v191, -0.5
    %v195 = vmul.f32 %v192, -0.5
    %v196 = vadd.f32 %v193, -0.5
    %v197 = vadd.f32 %v194, -0.5
    %v198 = vadd.f32 %v195, -0.5
    %v199 = vmul.f32 %v196, 1.442695
    %v200 = vpow.pop %v199
    %v201 = vmul.f32 %v197, 1.442695
    %v202 = vpow.pop %v201
    %v203 = vmul.f32 %v198, 1.442695
    %v204 = vpow.pop %v203
    %v205 = vadd.f32 %v169, %v200
    %v206 = vadd.f32 %v170, %v202
    %v207 = vadd.f32 %v171, %v204
    %208 = vrot.lane.b32.xlu0 %v56, 127
    %v209 = vpop.permute.xlu0 %208
    %210 = vrot.lane.b32.xlu0 %v57, 127
    %v211 = vpop.permute.xlu0 %210
    %212 = vrot.lane.b32.xlu0 %v58, 127
    %v213 = vpop.permute.xlu0 %212
    %214 = vrot.lane.b32.xlu0 %v59, 127
    %v215 = vpop.permute.xlu0 %214
    %vm216 = vcmask 1039360
    %v217 = vsel %vm216, %v209, %v211
    %v218 = vsel %vm216, %v211, %v213
    %v219 = vsel %vm216, %v213, %v215
    %v223 = vsub.f32 %v56, %v217
    %v224 = vsub.f32 %v57, %v218
    %v225 = vsub.f32 %v58, %v219
    %v226 = vmul.f32 %v223, %v223
    %v227 = vmul.f32 %v224, %v224
    %v228 = vmul.f32 %v225, %v225
    %v229 = vmul.f32 %v226, -0.5
    %v230 = vmul.f32 %v227, -0.5
    %v231 = vmul.f32 %v228, -0.5
    %v232 = vadd.f32 %v229, -0.5
    %v233 = vadd.f32 %v230, -0.5
    %v234 = vadd.f32 %v231, -0.5
    %v235 = vmul.f32 %v232, 1.442695
    %v236 = vpow.pop %v235
    %v237 = vmul.f32 %v233, 1.442695
    %v238 = vpow.pop %v237
    %v239 = vmul.f32 %v234, 1.442695
    %v240 = vpow.pop %v239
    %v241 = vadd.f32 %v205, %v236
    %v242 = vadd.f32 %v206, %v238
    %v243 = vadd.f32 %v207, %v240
    %244 = vrot.lane.b32.xlu0 %v56, 108
    %v245 = vpop.permute.xlu0 %244
    %246 = vrot.lane.b32.xlu0 %v57, 108
    %v247 = vpop.permute.xlu0 %246
    %248 = vrot.lane.b32.xlu0 %v58, 108
    %v249 = vpop.permute.xlu0 %248
    %250 = vrot.lane.b32.xlu0 %v59, 108
    %v251 = vpop.permute.xlu0 %250
    %vm252 = vcmask 883712
    %v253 = vsel %vm252, %v245, %v247
    %v254 = vsel %vm252, %v247, %v249
    %v255 = vsel %vm252, %v249, %v251
    %v259 = vsub.f32 %v56, %v253
    %v260 = vsub.f32 %v57, %v254
    %v261 = vsub.f32 %v58, %v255
    %v262 = vmul.f32 %v259, %v259
    %v263 = vmul.f32 %v260, %v260
    %v264 = vmul.f32 %v261, %v261
    %v265 = vmul.f32 %v262, -0.5
    %v266 = vmul.f32 %v263, -0.5
    %v267 = vmul.f32 %v264, -0.5
    %v268 = vadd.f32 %v265, -0.70710677
    %v269 = vadd.f32 %v266, -0.70710677
    %v270 = vadd.f32 %v267, -0.70710677
    %v271 = vmul.f32 %v268, 1.442695
    %v272 = vpow.pop %v271
    %v273 = vmul.f32 %v269, 1.442695
    %v274 = vpow.pop %v273
    %v275 = vmul.f32 %v270, 1.442695
    %v276 = vpow.pop %v275
    %v277 = vadd.f32 %v241, %v272
    %v278 = vadd.f32 %v242, %v274
    %v279 = vadd.f32 %v243, %v276
    %280 = vrot.lane.b32.xlu0 %v56, 110
    %v281 = vpop.permute.xlu0 %280
    %282 = vrot.lane.b32.xlu0 %v57, 110
    %v283 = vpop.permute.xlu0 %282
    %284 = vrot.lane.b32.xlu0 %v58, 110
    %v285 = vpop.permute.xlu0 %284
    %286 = vrot.lane.b32.xlu0 %v59, 110
    %v287 = vpop.permute.xlu0 %286
    %vm288 = vcmask 900096
    %v289 = vsel %vm288, %v281, %v283
    %v290 = vsel %vm288, %v283, %v285
    %v291 = vsel %vm288, %v285, %v287
    %v295 = vsub.f32 %v56, %v289
    %v296 = vsub.f32 %v57, %v290
    %v297 = vsub.f32 %v58, %v291
    %v298 = vmul.f32 %v295, %v295
    %v299 = vmul.f32 %v296, %v296
    %v300 = vmul.f32 %v297, %v297
    %v301 = vmul.f32 %v298, -0.5
    %v302 = vmul.f32 %v299, -0.5
    %v303 = vmul.f32 %v300, -0.5
    %v304 = vadd.f32 %v301, -0.5
    %v305 = vadd.f32 %v302, -0.5
    %v306 = vadd.f32 %v303, -0.5
    %v307 = vmul.f32 %v304, 1.442695
    %v308 = vpow.pop %v307
    %v309 = vmul.f32 %v305, 1.442695
    %v310 = vpow.pop %v309
    %v311 = vmul.f32 %v306, 1.442695
    %v312 = vpow.pop %v311
    %v313 = vadd.f32 %v277, %v308
    %v314 = vadd.f32 %v278, %v310
    %v315 = vadd.f32 %v279, %v312
    %316 = vrot.lane.b32.xlu0 %v56, 109
    %v317 = vpop.permute.xlu0 %316
    %318 = vrot.lane.b32.xlu0 %v57, 109
    %v319 = vpop.permute.xlu0 %318
    %320 = vrot.lane.b32.xlu0 %v58, 109
    %v321 = vpop.permute.xlu0 %320
    %322 = vrot.lane.b32.xlu0 %v59, 109
    %v323 = vpop.permute.xlu0 %322
    %vm324 = vcmask 891904
    %v325 = vsel %vm324, %v317, %v319
    %v326 = vsel %vm324, %v319, %v321
    %v327 = vsel %vm324, %v321, %v323
    %v331 = vsub.f32 %v56, %v325
    %v332 = vsub.f32 %v57, %v326
    %v333 = vsub.f32 %v58, %v327
    %v334 = vmul.f32 %v331, %v331
    %v335 = vmul.f32 %v332, %v332
    %v336 = vmul.f32 %v333, %v333
    %v337 = vmul.f32 %v334, -0.5
    %v338 = vmul.f32 %v335, -0.5
    %v339 = vmul.f32 %v336, -0.5
    %v340 = vadd.f32 %v337, -0.70710677
    %v341 = vadd.f32 %v338, -0.70710677
    %v342 = vadd.f32 %v339, -0.70710677
    %v343 = vmul.f32 %v340, 1.442695
    %v344 = vpow.pop %v343
    %v345 = vmul.f32 %v341, 1.442695
    %v346 = vpow.pop %v345
    %v347 = vmul.f32 %v342, 1.442695
    %v348 = vpow.pop %v347
    %v349 = vadd.f32 %v313, %v344
    %v350 = vadd.f32 %v314, %v346
    %v351 = vadd.f32 %v315, %v348
    %v352 = vld [vmem:[#allocation5] sm:$0xff]
    %v353 = vld [vmem:[#allocation5 + $0x8] sm:$0xff]
    %v354 = vld [vmem:[#allocation5 + $0x10] sm:$0xff]
    %v355 = vmul.f32 %v352, 0.11111111
    %v356 = vmul.f32 %v353, 0.11111111
    %v357 = vmul.f32 %v354, 0.11111111
    %v358 = vmul.f32 %v349, %v355
    %v359 = vmul.f32 %v350, %v356
    %v360 = vmul.f32 %v351, %v357
    %v361 = vld [vmem:[#allocation7] sm:$0xff]
    %v362 = vld [vmem:[#allocation7 + $0x8] sm:$0xff]
    %v363 = vld [vmem:[#allocation7 + $0x10] sm:$0xff]
    %v364 = vmul.f32 %v361, 1.0729839
    %v365 = vmul.f32 %v362, 1.0729839
    %v366 = vmul.f32 %v363, 1.0729839
    %v367 = vadd.f32 %v358, %v364
    %v368 = vadd.f32 %v359, %v365
    %v369 = vadd.f32 %v360, %v366
    %370 = vst [vmem:[#allocation8] sm:$0xff] %v367
    %371 = vst [vmem:[#allocation8 + $0x8] sm:$0xff] %v368
    %372 = vst [vmem:[#allocation8 + $0x10] sm:$0xff] %v369
    // Predicated region
    $region26: #{tpu_custom_call.1} parent=1 // pred_check
      _
    $region27: #{tpu_custom_call.1} parent=1 // pred_check_branch
      %374 = sbr.rel (0) target = $region29
    $region28: #{tpu_custom_call.1} parent=1 // pred_region
      %376 = vsyncadd [#allocation4], 0
      %s378 = sshll.u32 [#allocation8], 4
      %s379 = int_to_ptr.vmem [resolvable:$true] %s378
      %s380 = sshll.u32 %s3, 4
      %s381 = int_to_ptr.hbm [resolvable:$true] %s380
      %383 = dma.vmem_to_hbm [thread:$0]  %s379, 384, %s381, [#allocation4]
    $region29: #{tpu_custom_call.1} parent=1 // pred_fallthru
      _
    // Predicated region
    $region30: #{tpu_custom_call.1} parent=1 // pred_check
      _
    $region31: #{tpu_custom_call.1} parent=1 // pred_check_branch
      %385 = sbr.rel (0) target = $region33
    $region32: #{tpu_custom_call.1} parent=1 // pred_region
      %387 = dma.done [#allocation4], 384
    $region33: #{tpu_custom_call.1} parent=1 // pred_fallthru
      _
    %388 = vsyncpa [#allocation3], 1
    %389 = vsyncpa [#allocation6], 1
    %390 = vsyncpa [#allocation4], 1

</llo_original>
